<compile_context>
chip_gen: v7x
topology: tpu7x:2x2x1
jax: 0.10.0
libtpu: 0.0.40
codegen_flags: <defaults>
</compile_context>

<pallas_src>
import functools
import math

import jax
import jax.numpy as jnp
from jax.experimental import pallas as pl
from jax.experimental.pallas import tpu as pltpu

# ----------------------------- configuration -----------------------------
B = 8            # batch
D = 32           # input features
C = 16           # number of classes (logits dim)
NUM_SAMPLES = 4  # ELBO Monte-Carlo samples
KL_WEIGHT = 1e-3
PRIOR_SIGMA = 1.0

_LOG_2PI = 1.8378770664093453  # log(2*pi)


def _log_normal(x, mu, sigma):
    # elementwise log N(x; mu, sigma) -- used only by the pure-JAX reference
    return -0.5 * _LOG_2PI - jnp.log(sigma) - 0.5 * ((x - mu) / sigma) ** 2


def elbo_kernel(xt_ref, wb_ref, out_ref, *, kl_weight, num_samples, prior_sigma,
                d_pad, num_classes):
    s, c = num_samples, num_classes
    sc = s * c

    xt = xt_ref[...]                      # [B, Dp + S*C]
    x_aug = xt[:, :d_pad]                 # [B, Dp]   ([x | 1 | 0-pad])
    t_all = xt[:, d_pad:]                 # [B, S*C]  one-hot targets tiled over samples
    batch = x_aug.shape[0]                # static python int

    mu_all = wb_ref[0]                    # [Dp, S*C] pre-tiled means  (bias = row D)
    rho_all = wb_ref[1]                   # [Dp, S*C] pre-tiled rhos
    eps_all = wb_ref[2]                   # [Dp, S*C] lane-stacked reparameterization noise

    # TODO(synk): log(softplus(rho)) underflows to -inf for very negative rho; fine
    # for the synthetic rho = -3 but use a stable log-softplus if rho can drift.
    sigma_all = jax.nn.softplus(rho_all)             # [Dp, S*C]
    wb_all = mu_all + sigma_all * eps_all            # sampled weights, all S at once

    # ---- single fused MXU matmul for all S samples (bias via augmented row) ----
    logits_all = jnp.dot(x_aug, wb_all,
                         preferred_element_type=jnp.float32)      # [B, S*C]

    # ---- criterion: mean cross-entropy per sample, summed over samples ----
    # one shared row-max over all S*C lanes is a valid stabilizer for every sample
    m = jnp.max(logits_all, axis=-1, keepdims=True)               # [B, 1]
    e = jnp.exp(logits_all - m)                                   # [B, S*C]
    # per-sample group sums via one tiny block-diagonal ones matmul on the idle
    # MXU (instead of S dependent cross-lane reductions through the XLU)
    row = jax.lax.broadcasted_iota(jnp.int32, (sc, s), 0)
    col = jax.lax.broadcasted_iota(jnp.int32, (sc, s), 1)
    grp = ((row >= col * c) & (row < (col + 1) * c)).astype(jnp.float32)  # [S*C, S]
    denom = jnp.dot(e, grp, preferred_element_type=jnp.float32)   # [B, S]
    lse = m + jnp.log(denom)                                      # [B, S]
    ce_total = (jnp.sum(lse) - jnp.sum(t_all * logits_all)) / batch

    # ---- KLDiv: sum_s (lvposterior_s - lprior_s), ONE fused reduction ----
    # per element: -log(sigma) - 0.5*eps^2 + log(prior_sigma) + 0.5*(w/prior_sigma)^2
    # (the -0.5*log(2*pi) constants cancel exactly; (w - mu)/sigma == eps by
    # construction; the wrapper's padding rows contribute exactly zero).
    inv_pvar = 1.0 / (prior_sigma * prior_sigma)
    kl_total = jnp.sum(
        (math.log(prior_sigma) - jnp.log(sigma_all))
        + 0.5 * (inv_pvar * (wb_all * wb_all) - eps_all * eps_all))

    # single scalar store, directly to SMEM
    out_ref[0, 0] = (ce_total + kl_weight * kl_total) / num_samples


def elbo_loss(x, targets_onehot, w_mu, w_rho, b_mu, b_rho, w_eps_ls, b_eps_ls,
              *, kl_weight=KL_WEIGHT, prior_sigma=PRIOR_SIGMA):
    bsz, d = x.shape
    c = w_mu.shape[1]
    s = w_eps_ls.shape[1] // c
    d1 = d + 1                                  # bias folded in as an extra row
    d_pad = ((d1 + 7) // 8) * 8                 # sublane-align the contraction dim
    npad = d_pad - d1
    f32 = jnp.float32

    # ---- layout plumbing only (cheap XLA, fuses into the two packed copies) ----
    # activations + tiled one-hot targets in one lane-dense slab: 1 input DMA
    x_aug = jnp.concatenate(
        [x, jnp.ones((bsz, 1), f32), jnp.zeros((bsz, npad), f32)], axis=1)
    t_all = jnp.tile(targets_onehot, (1, s))                        # [B, S*C]
    xt = jnp.concatenate([x_aug, t_all], axis=1)                    # [B, Dp + S*C]

    # variational params + noise in one slab: 1 input DMA.  Padding rows are chosen
    # so their KL contribution is exactly zero (mu=0, eps=0, softplus(rho)=prior_sigma)
    # and they don't perturb the matmul (x pad lanes are zero, sampled w is zero).
    rho_pad = math.log(math.expm1(prior_sigma))
    mu = jnp.concatenate([w_mu, b_mu, jnp.zeros((npad, c), f32)], axis=0)
    rho = jnp.concatenate([w_rho, b_rho, jnp.full((npad, c), rho_pad, f32)], axis=0)
    eps = jnp.concatenate([w_eps_ls, b_eps_ls, jnp.zeros((npad, s * c), f32)], axis=0)
    wb = jnp.stack([jnp.tile(mu, (1, s)), jnp.tile(rho, (1, s)), eps])  # [3, Dp, S*C]

    kernel = functools.partial(
        elbo_kernel, kl_weight=kl_weight, num_samples=s, prior_sigma=prior_sigma,
        d_pad=d_pad, num_classes=c)
    out = pl.pallas_call(
        kernel,
        out_shape=jax.ShapeDtypeStruct((1, 1), jnp.float32),
        # ~35 KiB total footprint: whole arrays resident in VMEM, no grid, no
        # pipelining (any tiling would only add per-step pipeline overhead).
        in_specs=[pl.BlockSpec(memory_space=pltpu.MemorySpace.VMEM)] * 2,
        out_specs=pl.BlockSpec(memory_space=pltpu.MemorySpace.SMEM),
    )(xt, wb)
    # torch returns a tensor of shape (1,)
    return out.reshape((1,))


def elbo_loss_ref(x, t_onehot, w_mu, w_rho, b_mu, b_rho, w_eps_ls, b_eps_ls):
    """Pure-JAX reference with the original (un-simplified) log-normal KL."""
    c = w_mu.shape[1]
    agg = jnp.zeros((1,), jnp.float32)
    for s in range(NUM_SAMPLES):
        w_sigma = jax.nn.softplus(w_rho)
        b_sigma = jax.nn.softplus(b_rho)
        w = w_mu + w_sigma * w_eps_ls[:, s * c:(s + 1) * c]
        b = b_mu + b_sigma * b_eps_ls[:, s * c:(s + 1) * c]
        logits = x @ w + b
        lse = jax.scipy.special.logsumexp(logits, axis=-1)
        ce = jnp.mean(lse - jnp.sum(t_onehot * logits, axis=-1))
        lvpost = (jnp.sum(_log_normal(w, w_mu, w_sigma)) +
                  jnp.sum(_log_normal(b, b_mu, b_sigma)))
        lprior = (jnp.sum(_log_normal(w, 0.0, PRIOR_SIGMA)) +
                  jnp.sum(_log_normal(b, 0.0, PRIOR_SIGMA)))
        agg = agg + ce + KL_WEIGHT * (lvpost - lprior)
    return agg / NUM_SAMPLES


if __name__ == "__main__":
    key = jax.random.PRNGKey(0)
    k_x, k_t, k_wmu, k_bmu, k_weps, k_beps = jax.random.split(key, 6)

    # inputs / targets
    x = jax.random.normal(k_x, (B, D), jnp.float32)
    targets = jax.random.randint(k_t, (B,), 0, C)
    t_onehot = jax.nn.one_hot(targets, C, dtype=jnp.float32)

    # deterministic variational parameters (synthetic init)
    w_mu = 0.1 * jax.random.normal(k_wmu, (D, C), jnp.float32)
    w_rho = jnp.full((D, C), -3.0, jnp.float32)
    b_mu = 0.1 * jax.random.normal(k_bmu, (1, C), jnp.float32)
    b_rho = jnp.full((1, C), -3.0, jnp.float32)

    # per-MC-sample reparameterization noise, sampled directly in lane-stacked
    # [*, S*C] layout (sample s occupies lanes s*C:(s+1)*C) -- no wrapper transpose.
    # TODO(synk): in-kernel sampling via pltpu.prng_* would drop these inputs but
    # breaks bit-exactness with the host-RNG reference, so noise stays an input.
    w_eps_ls = jax.random.normal(k_weps, (D, NUM_SAMPLES * C), jnp.float32)
    b_eps_ls = jax.random.normal(k_beps, (1, NUM_SAMPLES * C), jnp.float32)

    out = elbo_loss(x, t_onehot, w_mu, w_rho, b_mu, b_rho, w_eps_ls, b_eps_ls)
    out = jax.block_until_ready(out)

    ref = elbo_loss_ref(x, t_onehot, w_mu, w_rho, b_mu, b_rho, w_eps_ls, b_eps_ls)
    assert out.shape == (1,)
    assert jnp.allclose(out, ref, rtol=1e-4, atol=1e-3), (out, ref)
    print("KERNEL_OK")
</pallas_src>

<mosaic_0001>
module attributes {stable_mosaic.version = 11 : i64} {
  func.func @elbo_kernel(%arg0: memref<8x104xf32, #tpu.memory_space<vmem>>, %arg1: memref<3x40x64xf32, #tpu.memory_space<vmem>>, %arg2: memref<1x1xf32, #tpu.memory_space<smem>>) attributes {dimension_semantics = [], scalar_prefetch = 0 : i64, scratch_operands = 0 : i64, tpu.core_type = #tpu.core_type<tc>} {
    %c0 = arith.constant 0 : index
    %c0_0 = arith.constant 0 : index
    %0 = vector.load %arg0[%c0, %c0_0] : memref<8x104xf32, #tpu.memory_space<vmem>>, vector<8x104xf32>
    %1 = vector.extract_strided_slice %0 {offsets = [0, 0], sizes = [8, 40], strides = [1, 1]} : vector<8x104xf32> to vector<8x40xf32>
    %2 = vector.extract_strided_slice %0 {offsets = [0, 40], sizes = [8, 64], strides = [1, 1]} : vector<8x104xf32> to vector<8x64xf32>
    %c0_1 = arith.constant 0 : index
    %c0_2 = arith.constant 0 : index
    %c0_3 = arith.constant 0 : index
    %3 = vector.load %arg1[%c0_1, %c0_2, %c0_3] : memref<3x40x64xf32, #tpu.memory_space<vmem>>, vector<1x40x64xf32>
    %4 = vector.shape_cast %3 : vector<1x40x64xf32> to vector<40x64xf32>
    %c1 = arith.constant 1 : index
    %c0_4 = arith.constant 0 : index
    %c0_5 = arith.constant 0 : index
    %5 = vector.load %arg1[%c1, %c0_4, %c0_5] : memref<3x40x64xf32, #tpu.memory_space<vmem>>, vector<1x40x64xf32>
    %6 = vector.shape_cast %5 : vector<1x40x64xf32> to vector<40x64xf32>
    %c2 = arith.constant 2 : index
    %c0_6 = arith.constant 0 : index
    %c0_7 = arith.constant 0 : index
    %7 = vector.load %arg1[%c2, %c0_6, %c0_7] : memref<3x40x64xf32, #tpu.memory_space<vmem>>, vector<1x40x64xf32>
    %8 = vector.shape_cast %7 : vector<1x40x64xf32> to vector<40x64xf32>
    %cst = arith.constant 0.000000e+00 : f32
    %9 = vector.broadcast %cst : f32 to vector<40x64xf32>
    %10 = arith.maximumf %6, %9 : vector<40x64xf32>
    %11 = vector.broadcast %cst : f32 to vector<40x64xf32>
    %12 = arith.subf %6, %11 : vector<40x64xf32>
    %13 = arith.cmpf one, %12, %12 : vector<40x64xf32>
    %14 = vector.broadcast %cst : f32 to vector<40x64xf32>
    %15 = arith.addf %6, %14 : vector<40x64xf32>
    %16 = math.absf %12 : vector<40x64xf32>
    %cst_8 = arith.constant 0.000000e+00 : f32
    %17 = vector.broadcast %cst_8 : f32 to vector<40x64xf32>
    %18 = arith.subf %17, %16 : vector<40x64xf32>
    %19 = math.exp %18 : vector<40x64xf32>
    %20 = math.log1p %19 : vector<40x64xf32>
    %21 = arith.addf %10, %20 : vector<40x64xf32>
    %22 = arith.select %13, %15, %21 : vector<40x64xi1>, vector<40x64xf32>
    %23 = arith.mulf %22, %8 : vector<40x64xf32>
    %24 = arith.addf %4, %23 : vector<40x64xf32>
    %cst_9 = arith.constant dense<0.000000e+00> : vector<8x64xf32>
    %25 = tpu.matmul %1, %24, %cst_9 {dimension_numbers = #tpu.dot_dimension_numbers<[1], [0], [0], [1], [0, 0, 1, 1], [], []>} : vector<8x40xf32>, vector<40x64xf32>, vector<8x64xf32> -> vector<8x64xf32>
    %cst_10 = arith.constant dense<0xFF800000> : vector<8xf32>
    %26 = vector.multi_reduction <maximumf>, %25, %cst_10 [1] : vector<8x64xf32> to vector<8xf32>
    %27 = vector.shape_cast %26 : vector<8xf32> to vector<8x1xf32>
    %28 = vector.broadcast %27 : vector<8x1xf32> to vector<8x64xf32>
    %29 = arith.subf %25, %28 : vector<8x64xf32>
    %30 = math.exp %29 : vector<8x64xf32>
    %31 = tpu.iota {dimensions = array<i32: 0>} : vector<64x4xi32>
    %32 = tpu.iota {dimensions = array<i32: 1>} : vector<64x4xi32>
    %c16_i32 = arith.constant 16 : i32
    %33 = vector.broadcast %c16_i32 : i32 to vector<64x4xi32>
    %34 = arith.muli %32, %33 : vector<64x4xi32>
    %35 = arith.cmpi sge, %31, %34 : vector<64x4xi32>
    %c1_i32 = arith.constant 1 : i32
    %36 = vector.broadcast %c1_i32 : i32 to vector<64x4xi32>
    %37 = arith.addi %32, %36 : vector<64x4xi32>
    %c16_i32_11 = arith.constant 16 : i32
    %38 = vector.broadcast %c16_i32_11 : i32 to vector<64x4xi32>
    %39 = arith.muli %37, %38 : vector<64x4xi32>
    %40 = arith.cmpi slt, %31, %39 : vector<64x4xi32>
    %41 = arith.andi %35, %40 : vector<64x4xi1>
    %42 = arith.extui %41 : vector<64x4xi1> to vector<64x4xi32>
    %43 = arith.sitofp %42 : vector<64x4xi32> to vector<64x4xf32>
    %cst_12 = arith.constant dense<0.000000e+00> : vector<8x4xf32>
    %44 = tpu.matmul %30, %43, %cst_12 {dimension_numbers = #tpu.dot_dimension_numbers<[1], [0], [0], [1], [0, 0, 1, 1], [], []>} : vector<8x64xf32>, vector<64x4xf32>, vector<8x4xf32> -> vector<8x4xf32>
    %45 = math.log %44 : vector<8x4xf32>
    %46 = vector.broadcast %27 : vector<8x1xf32> to vector<8x4xf32>
    %47 = arith.addf %46, %45 : vector<8x4xf32>
    %48 = vector.shape_cast %47 : vector<8x4xf32> to vector<1x8x4xf32>
    %cst_13 = arith.constant dense<0.000000e+00> : vector<1xf32>
    %49 = vector.multi_reduction <add>, %48, %cst_13 [1, 2] : vector<1x8x4xf32> to vector<1xf32>
    %50 = vector.shape_cast %49 : vector<1xf32> to vector<1x1x1xf32>
    %51 = vector.extract %50[0, 0, 0] : f32 from vector<1x1x1xf32>
    %52 = arith.mulf %2, %25 : vector<8x64xf32>
    %53 = vector.shape_cast %52 : vector<8x64xf32> to vector<1x8x64xf32>
    %cst_14 = arith.constant dense<0.000000e+00> : vector<1xf32>
    %54 = vector.multi_reduction <add>, %53, %cst_14 [1, 2] : vector<1x8x64xf32> to vector<1xf32>
    %55 = vector.shape_cast %54 : vector<1xf32> to vector<1x1x1xf32>
    %56 = vector.extract %55[0, 0, 0] : f32 from vector<1x1x1xf32>
    %57 = arith.subf %51, %56 : f32
    %cst_15 = arith.constant 8.000000e+00 : f32
    %58 = arith.divf %57, %cst_15 : f32
    %59 = math.log %22 : vector<40x64xf32>
    %cst_16 = arith.constant 0.000000e+00 : f32
    %60 = vector.broadcast %cst_16 : f32 to vector<40x64xf32>
    %61 = arith.subf %60, %59 : vector<40x64xf32>
    %62 = arith.mulf %24, %24 : vector<40x64xf32>
    %cst_17 = arith.constant 1.000000e+00 : f32
    %63 = vector.broadcast %cst_17 : f32 to vector<40x64xf32>
    %64 = arith.mulf %63, %62 : vector<40x64xf32>
    %65 = arith.mulf %8, %8 : vector<40x64xf32>
    %66 = arith.subf %64, %65 : vector<40x64xf32>
    %cst_18 = arith.constant 5.000000e-01 : f32
    %67 = vector.broadcast %cst_18 : f32 to vector<40x64xf32>
    %68 = arith.mulf %67, %66 : vector<40x64xf32>
    %69 = arith.addf %61, %68 : vector<40x64xf32>
    %70 = vector.shape_cast %69 : vector<40x64xf32> to vector<1x40x64xf32>
    %cst_19 = arith.constant dense<0.000000e+00> : vector<1xf32>
    %71 = vector.multi_reduction <add>, %70, %cst_19 [1, 2] : vector<1x40x64xf32> to vector<1xf32>
    %72 = vector.shape_cast %71 : vector<1xf32> to vector<1x1x1xf32>
    %73 = vector.extract %72[0, 0, 0] : f32 from vector<1x1x1xf32>
    %cst_20 = arith.constant 1.000000e-03 : f32
    %74 = arith.mulf %cst_20, %73 : f32
    %75 = arith.addf %58, %74 : f32
    %cst_21 = arith.constant 4.000000e+00 : f32
    %76 = arith.divf %75, %cst_21 : f32
    %c0_22 = arith.constant 0 : index
    %c0_23 = arith.constant 0 : index
    %77 = memref.load %arg2[%c0_22, %c0_23] : memref<1x1xf32, #tpu.memory_space<smem>>
    memref.store %76, %arg2[%c0_22, %c0_23] : memref<1x1xf32, #tpu.memory_space<smem>>
    return
  }
}

</mosaic_0001>

<llo_original>
// kernel: tpu_custom_call.1
$region0: #{tpu_custom_call.1}
  #allocation0 [shape = 'u32[]', space=smem, size = 0x4, offset = 0x4, fixed_abs, tag = 'smem constant byte address 0x4 - core index']
  #allocation1 [shape = 'u32[144,128]{1,0:T(1,128)}', space=vmem, size = 0x12000, scoped, tag = 'internal scratch']
  %s0 = inlined_call_operand.hbm [shape: f32[8,104], index: 0, kind: input, shape index: {}]
  %s1 = inlined_call_operand.hbm [shape: f32[3,40,64], index: 1, kind: input, shape index: {}]
  %s2 = inlined_call_operand.hbm [shape: f32[1,1], index: 2, kind: output, shape index: {}]
  %s3 = sld [smem:[#allocation0]]
  $region26: #{tpu_custom_call.1} parent=0
    _
  %s5 = ssub.s32 1, %s3
  %s6 = scalar_select 0, %s5, %s3
  $region1: #{tpu_custom_call.1} parent=0
    #allocation2 [shape = 'u8[4096]{0}', space=vmem, size = 0x1000, scoped, tag = 'input window, operand 0, single buffered']
    #allocation3 [shape = 's32[1]{0}', space=sflag, size = 0x4, scoped, tag = 'scoped memory for tpu_custom_call.1']
    #allocation4 [shape = 's32[1]{0}', space=sflag, size = 0x4, scoped, tag = 'scoped memory for tpu_custom_call.1']
    #allocation5 [shape = 'u8[61440]{0}', space=vmem, size = 0xf000, scoped, tag = 'input window, operand 1, single buffered']
    #allocation6 [shape = 's32[1]{0}', space=sflag, size = 0x4, scoped, tag = 'scoped memory for tpu_custom_call.1']
    #allocation7 [shape = 'u8[512]{0}', space=smem, size = 0x200, scoped, tag = 'output window, operand 0, single buffered']
    %7 = vsyncpa [#allocation3], 0
    %8 = vsyncpa [#allocation6], 0
    %9 = vsyncpa [#allocation4], 0
    // Predicated region
    $region2: #{tpu_custom_call.1} parent=1 // pred_check
      _
    $region3: #{tpu_custom_call.1} parent=1 // pred_check_branch
      %11 = sbr.rel (0) target = $region5
    $region4: #{tpu_custom_call.1} parent=1 // pred_region
      %s13 = ssub.s32 128, 128
      %14 = vsyncadd [#allocation3], %s13
      %s16 = sshll.u32 [#allocation2], 4
      %s17 = int_to_ptr.vmem [resolvable:$true] %s16
      %19 = dma.hbm_to_vmem [thread:$0]  %s0, 128, %s17, [#allocation3]
    $region5: #{tpu_custom_call.1} parent=1 // pred_fallthru
      _
    // Predicated region
    $region6: #{tpu_custom_call.1} parent=1 // pred_check
      _
    $region7: #{tpu_custom_call.1} parent=1 // pred_check_branch
      %21 = sbr.rel (0) target = $region9
    $region8: #{tpu_custom_call.1} parent=1 // pred_region
      %s23 = ssub.s32 1920, 1920
      %24 = vsyncadd [#allocation6], %s23
      %s25 = sshll.u32 [#allocation5], 4
      %s26 = int_to_ptr.vmem [resolvable:$true] %s25
      %31 = dma.hbm_to_vmem [thread:$0]  %s1, 1920, %s26, [#allocation6], 128, 128, 8
    $region9: #{tpu_custom_call.1} parent=1 // pred_fallthru
      _
    // Predicated region
    $region10: #{tpu_custom_call.1} parent=1 // pred_check
      _
    $region11: #{tpu_custom_call.1} parent=1 // pred_check_branch
      %33 = sbr.rel (0) target = $region13
    $region12: #{tpu_custom_call.1} parent=1 // pred_region
      %34 = dma.done [#allocation3], 128
    $region13: #{tpu_custom_call.1} parent=1 // pred_fallthru
      _
    // Predicated region
    $region14: #{tpu_custom_call.1} parent=1 // pred_check
      _
    $region15: #{tpu_custom_call.1} parent=1 // pred_check_branch
      %36 = sbr.rel (0) target = $region17
    $region16: #{tpu_custom_call.1} parent=1 // pred_region
      %37 = dma.done [#allocation6], 1920
    $region17: #{tpu_custom_call.1} parent=1 // pred_fallthru
      _
    %v38 = vld [vmem:[#allocation2] sm:$0xff]
    %v39 = vld [vmem:[#allocation5] sm:$0xff]
    %v40 = vld [vmem:[#allocation5 + $0x8] sm:$0xff]
    %v41 = vld [vmem:[#allocation5 + $0x10] sm:$0xff]
    %v42 = vld [vmem:[#allocation5 + $0x18] sm:$0xff]
    %v43 = vld [vmem:[#allocation5 + $0x20] sm:$0xff]
    %s44 = scalar_lea.vmem [#allocation5], 40
    %v45 = vld [vmem:[%s44] sm:$0xff]
    %v46 = vld [vmem:[%s44 + $0x8] sm:$0xff]
    %v47 = vld [vmem:[%s44 + $0x10] sm:$0xff]
    %v48 = vld [vmem:[%s44 + $0x18] sm:$0xff]
    %v49 = vld [vmem:[%s44 + $0x20] sm:$0xff]
    %s50 = scalar_lea.vmem [#allocation5], 80
    %v51 = vld [vmem:[%s50] sm:$0xff]
    %v52 = vld [vmem:[%s50 + $0x8] sm:$0xff]
    %v53 = vld [vmem:[%s50 + $0x10] sm:$0xff]
    %v54 = vld [vmem:[%s50 + $0x18] sm:$0xff]
    %v55 = vld [vmem:[%s50 + $0x20] sm:$0xff]
    %v56 = vmax.f32 %v45, 0.0
    %v57 = vmax.f32 %v46, 0.0
    %v58 = vmax.f32 %v47, 0.0
    %v59 = vmax.f32 %v48, 0.0
    %v60 = vmax.f32 %v49, 0.0
    %vm61 = vcmp.ne.f32.partialorder %v45, %v45
    %vm62 = vcmp.ne.f32.partialorder %v46, %v46
    %vm63 = vcmp.ne.f32.partialorder %v47, %v47
    %vm64 = vcmp.ne.f32.partialorder %v48, %v48
    %vm65 = vcmp.ne.f32.partialorder %v49, %v49
    %v66 = vadd.f32 %v45, 0.0
    %v67 = vadd.f32 %v46, 0.0
    %v68 = vadd.f32 %v47, 0.0
    %v69 = vadd.f32 %v48, 0.0
    %v70 = vadd.f32 %v49, 0.0
    %v71 = vand.u32 2147483647, %v45
    %v72 = vand.u32 2147483647, %v46
    %v73 = vand.u32 2147483647, %v47
    %v74 = vand.u32 2147483647, %v48
    %v75 = vand.u32 2147483647, %v49
    %v76 = vsub.f32 0.0, %v71
    %v77 = vsub.f32 0.0, %v72
    %v78 = vsub.f32 0.0, %v73
    %v79 = vsub.f32 0.0, %v74
    %v80 = vsub.f32 0.0, %v75
    %v81 = vmul.f32 %v76, 1.442695
    %v82 = vpow.pop %v81
    %v83 = vmul.f32 %v77, 1.442695
    %v84 = vpow.pop %v83
    %v85 = vmul.f32 %v78, 1.442695
    %v86 = vpow.pop %v85
    %v87 = vmul.f32 %v79, 1.442695
    %v88 = vpow.pop %v87
    %v89 = vmul.f32 %v80, 1.442695
    %v90 = vpow.pop %v89
    %v91 = vadd.f32 %v82, 1.0
    %v92 = vlog2.pop %v91
    %v93 = vmul.f32 %v92, 0.6931472
    %v94 = vmul.f32 -0.5, %v82
    %v95 = vadd.f32 %v94, 1.0
    %v96 = vmul.f32 %v95, %v82
    %v97 = vand.u32 2147483647, %v82
    %vm98 = vcmp.lt.f32.partialorder %v97, 0.0004427343
    %v99 = vsel %vm98, %v96, %v93
    %v100 = vadd.f32 %v84, 1.0
    %v101 = vlog2.pop %v100
    %v102 = vmul.f32 %v101, 0.6931472
    %v103 = vmul.f32 -0.5, %v84
    %v104 = vadd.f32 %v103, 1.0
    %v105 = vmul.f32 %v104, %v84
    %v106 = vand.u32 2147483647, %v84
    %vm107 = vcmp.lt.f32.partialorder %v106, 0.0004427343
    %v108 = vsel %vm107, %v105, %v102
    %v109 = vadd.f32 %v86, 1.0
    %v110 = vlog2.pop %v109
    %v111 = vmul.f32 %v110, 0.6931472
    %v112 = vmul.f32 -0.5, %v86
    %v113 = vadd.f32 %v112, 1.0
    %v114 = vmul.f32 %v113, %v86
    %v115 = vand.u32 2147483647, %v86
    %vm116 = vcmp.lt.f32.partialorder %v115, 0.0004427343
    %v117 = vsel %vm116, %v114, %v111
    %v118 = vadd.f32 %v88, 1.0
    %v119 = vlog2.pop %v118
    %v120 = vmul.f32 %v119, 0.6931472
    %v121 = vmul.f32 -0.5, %v88
    %v122 = vadd.f32 %v121, 1.0
    %v123 = vmul.f32 %v122, %v88
    %v124 = vand.u32 2147483647, %v88
    %vm125 = vcmp.lt.f32.partialorder %v124, 0.0004427343
    %v126 = vsel %vm125, %v123, %v120
    %v127 = vadd.f32 %v90, 1.0
    %v128 = vlog2.pop %v127
    %v129 = vmul.f32 %v128, 0.6931472
    %v130 = vmul.f32 -0.5, %v90
    %v131 = vadd.f32 %v130, 1.0
    %v132 = vmul.f32 %v131, %v90
    %v133 = vand.u32 2147483647, %v90
    %vm134 = vcmp.lt.f32.partialorder %v133, 0.0004427343
    %v135 = vsel %vm134, %v132, %v129
    %v136 = vadd.f32 %v56, %v99
    %v137 = vadd.f32 %v57, %v108
    %v138 = vadd.f32 %v58, %v117
    %v139 = vadd.f32 %v59, %v126
    %v140 = vadd.f32 %v60, %v135
    %v141 = vsel %vm61, %v66, %v136
    %v142 = vsel %vm62, %v67, %v137
    %v143 = vsel %vm63, %v68, %v138
    %v144 = vsel %vm64, %v69, %v139
    %v145 = vsel %vm65, %v70, %v140
    %v146 = vmul.f32 %v141, %v51
    %v147 = vmul.f32 %v142, %v52
    %v148 = vmul.f32 %v143, %v53
    %v149 = vmul.f32 %v144, %v54
    %v150 = vmul.f32 %v145, %v55
    %v151 = vadd.f32 %v39, %v146
    %v152 = vadd.f32 %v40, %v147
    %v153 = vadd.f32 %v41, %v148
    %v154 = vadd.f32 %v42, %v149
    %v155 = vadd.f32 %v43, %v150
    %vm156 = vcmask 326656
    %v158 = vsel %vm156, %v38, 0
    %160 = vmatprep.subr.mxu0 0.0
    %161 = vmatpush1.msra.mxu0 %v151
    %162 = vmatprep.subr.mxu0 0.0
    %163 = vmatpush1.msra.mxu0 %v152
    %164 = vmatprep.subr.mxu0 0.0
    %165 = vmatpush1.msra.mxu0 %v153
    %166 = vmatprep.subr.mxu0 0.0
    %167 = vmatpush1.msra.mxu0 %v154
    %168 = vmatprep.subr.mxu0 0.0
    %169 = vmatpush1.msra.mxu0 %v155
    %170 = vmatprep.subr.mxu0 0.0
    %171 = vmatpush1.msra.mxu0 0.0
    %172 = vmatprep.subr.mxu0 0.0
    %173 = vmatpush1.msra.mxu0 0.0
    %174 = vmatprep.subr.mxu0 0.0
    %175 = vmatpush1.msra.mxu0 0.0
    %176 = vmatprep.subr.mxu0 0.0
    %177 = vmatpush1.msra.mxu0 0.0
    %178 = vmatprep.subr.mxu0 0.0
    %179 = vmatpush1.msra.mxu0 0.0
    %180 = vmatprep.subr.mxu0 0.0
    %181 = vmatpush1.msra.mxu0 0.0
    %182 = vmatprep.subr.mxu0 0.0
    %183 = vmatpush1.msra.mxu0 0.0
    %184 = vmatprep.subr.mxu0 0.0
    %185 = vmatpush1.msra.mxu0 0.0
    %186 = vmatprep.subr.mxu0 0.0
    %187 = vmatpush1.msra.mxu0 0.0
    %188 = vmatprep.subr.mxu0 0.0
    %189 = vmatpush1.msra.mxu0 0.0
    %190 = vmatprep.subr.mxu0 0.0
    %191 = vmatpush1.msra.mxu0 0.0
    %192 = vmatprep.subr.mxu0 0.0
    %193 = vmatpush1.msra.mxu0 0.0
    %194 = vmatprep.subr.mxu0 0.0
    %195 = vmatpush1.msra.mxu0 0.0
    %196 = vmatprep.subr.mxu0 0.0
    %197 = vmatpush1.msra.mxu0 0.0
    %198 = vmatprep.subr.mxu0 0.0
    %199 = vmatpush1.msra.mxu0 0.0
    %200 = vmatprep.subr.mxu0 0.0
    %201 = vmatpush1.msra.mxu0 0.0
    %202 = vmatprep.subr.mxu0 0.0
    %203 = vmatpush1.msra.mxu0 0.0
    %204 = vmatprep.subr.mxu0 0.0
    %205 = vmatpush1.msra.mxu0 0.0
    %206 = vmatprep.subr.mxu0 0.0
    %207 = vmatpush1.msra.mxu0 0.0
    %208 = vmatprep.subr.mxu0 0.0
    %209 = vmatpush1.msra.mxu0 0.0
    %210 = vmatprep.subr.mxu0 0.0
    %211 = vmatpush1.msra.mxu0 0.0
    %212 = vmatprep.subr.mxu0 0.0
    %213 = vmatpush1.msra.mxu0 0.0
    %214 = vmatprep.subr.mxu0 0.0
    %215 = vmatpush1.msra.mxu0 0.0
    %216 = vmatprep.subr.mxu0 0.0
    %217 = vmatpush1.msra.mxu0 0.0
    %218 = vmatprep.subr.mxu0 0.0
    %219 = vmatpush1.msra.mxu0 0.0
    %220 = vmatprep.subr.mxu0 0.0
    %221 = vmatpush1.msra.mxu0 0.0
    %222 = vmatprep.subr.mxu0 0.0
    %223 = vmatpush1.msra.mxu0 0.0
    %224 = vmatprep.mubr.f32.mxu0 0.0
    %225 = vmatmul.mubr.f32.gmra.mrb[0].mxu0 %v158
    %v226 = vpop.f32.mrb[0].mxu0
    %v227 = vadd.f32 0.0, %v226
    %v228 = vpop.f32.mrb[0].mxu0
    %229 = vdwg.mxu0
    %vm230 = vcmask 523264
    %v231 = vsel %vm230, %v227, -inf
    %232 = vmax.xlane.f32.xlu0 %v231
    %v233 = vpop.xlane.xlu0 %232
    %v234 = vsub.f32 %v227, %v233
    %v235 = vmul.f32 %v234, 1.442695
    %v236 = vpow.pop %v235
    %v237 = vlaneseq
    %v238 = vshrl.u32 %v237, 7
    %v239 = vadd.s32 %v238, 8
    %v240 = vadd.s32 %v238, 16
    %v241 = vadd.s32 %v238, 24
    %v242 = vadd.s32 %v238, 32
    %v243 = vadd.s32 %v238, 40
    %v244 = vadd.s32 %v238, 48
    %v245 = vadd.s32 %v238, 56
    %v246 = vlaneseq
    %v247 = vand.u32 %v246, 127
    %v248 = vmul.u32 %v247, 16
    %vm249 = vcmp.ge.s32.totalorder %v238, %v248
    %vm250 = vcmp.ge.s32.totalorder %v239, %v248
    %vm251 = vcmp.ge.s32.totalorder %v240, %v248
    %vm252 = vcmp.ge.s32.totalorder %v241, %v248
    %vm253 = vcmp.ge.s32.totalorder %v242, %v248
    %vm254 = vcmp.ge.s32.totalorder %v243, %v248
    %vm255 = vcmp.ge.s32.totalorder %v244, %v248
    %vm256 = vcmp.ge.s32.totalorder %v245, %v248
    %v257 = vadd.s32 %v247, 1
    %v258 = vmul.u32 %v257, 16
    %vm259 = vcmp.lt.s32.totalorder %v238, %v258
    %vm260 = vcmp.lt.s32.totalorder %v239, %v258
    %vm261 = vcmp.lt.s32.totalorder %v240, %v258
    %vm262 = vcmp.lt.s32.totalorder %v241, %v258
    %vm263 = vcmp.lt.s32.totalorder %v242, %v258
    %vm264 = vcmp.lt.s32.totalorder %v243, %v258
    %vm265 = vcmp.lt.s32.totalorder %v244, %v258
    %vm266 = vcmp.lt.s32.totalorder %v245, %v258
    %vm267 = vmand %vm249, %vm259
    %vm268 = vmand %vm250, %vm260
    %vm269 = vmand %vm251, %vm261
    %vm270 = vmand %vm252, %vm262
    %vm271 = vmand %vm253, %vm263
    %vm272 = vmand %vm254, %vm264
    %vm273 = vmand %vm255, %vm265
    %vm274 = vmand %vm256, %vm266
    %v275 = vsel %vm267, 1, 0
    %v276 = vsel %vm268, 1, 0
    %v277 = vsel %vm269, 1, 0
    %v278 = vsel %vm270, 1, 0
    %v279 = vsel %vm271, 1, 0
    %v280 = vsel %vm272, 1, 0
    %v281 = vsel %vm273, 1, 0
    %v282 = vsel %vm274, 1, 0
    %v283 = vcvt.s32.f32 %v275
    %v284 = vcvt.s32.f32 %v276
    %v285 = vcvt.s32.f32 %v277
    %v286 = vcvt.s32.f32 %v278
    %v287 = vcvt.s32.f32 %v279
    %v288 = vcvt.s32.f32 %v280
    %v289 = vcvt.s32.f32 %v281
    %v290 = vcvt.s32.f32 %v282
    %v292 = vsel %vm230, %v236, 0
    %294 = vmatprep.subr.mxu0 0.0
    %295 = vmatpush1.msra.mxu0 %v283
    %296 = vmatprep.subr.mxu0 0.0
    %297 = vmatpush1.msra.mxu0 %v284
    %298 = vmatprep.subr.mxu0 0.0
    %299 = vmatpush1.msra.mxu0 %v285
    %300 = vmatprep.subr.mxu0 0.0
    %301 = vmatpush1.msra.mxu0 %v286
    %302 = vmatprep.subr.mxu0 0.0
    %303 = vmatpush1.msra.mxu0 %v287
    %304 = vmatprep.subr.mxu0 0.0
    %305 = vmatpush1.msra.mxu0 %v288
    %306 = vmatprep.subr.mxu0 0.0
    %307 = vmatpush1.msra.mxu0 %v289
    %308 = vmatprep.subr.mxu0 0.0
    %309 = vmatpush1.msra.mxu0 %v290
    %310 = vmatprep.subr.mxu0 0.0
    %311 = vmatpush1.msra.mxu0 0.0
    %312 = vmatprep.subr.mxu0 0.0
    %313 = vmatpush1.msra.mxu0 0.0
    %314 = vmatprep.subr.mxu0 0.0
    %315 = vmatpush1.msra.mxu0 0.0
    %316 = vmatprep.subr.mxu0 0.0
    %317 = vmatpush1.msra.mxu0 0.0
    %318 = vmatprep.subr.mxu0 0.0
    %319 = vmatpush1.msra.mxu0 0.0
    %320 = vmatprep.subr.mxu0 0.0
    %321 = vmatpush1.msra.mxu0 0.0
    %322 = vmatprep.subr.mxu0 0.0
    %323 = vmatpush1.msra.mxu0 0.0
    %324 = vmatprep.subr.mxu0 0.0
    %325 = vmatpush1.msra.mxu0 0.0
    %326 = vmatprep.subr.mxu0 0.0
    %327 = vmatpush1.msra.mxu0 0.0
    %328 = vmatprep.subr.mxu0 0.0
    %329 = vmatpush1.msra.mxu0 0.0
    %330 = vmatprep.subr.mxu0 0.0
    %331 = vmatpush1.msra.mxu0 0.0
    %332 = vmatprep.subr.mxu0 0.0
    %333 = vmatpush1.msra.mxu0 0.0
    %334 = vmatprep.subr.mxu0 0.0
    %335 = vmatpush1.msra.mxu0 0.0
    %336 = vmatprep.subr.mxu0 0.0
    %337 = vmatpush1.msra.mxu0 0.0
    %338 = vmatprep.subr.mxu0 0.0
    %339 = vmatpush1.msra.mxu0 0.0
    %340 = vmatprep.subr.mxu0 0.0
    %341 = vmatpush1.msra.mxu0 0.0
    %342 = vmatprep.subr.mxu0 0.0
    %343 = vmatpush1.msra.mxu0 0.0
    %344 = vmatprep.subr.mxu0 0.0
    %345 = vmatpush1.msra.mxu0 0.0
    %346 = vmatprep.subr.mxu0 0.0
    %347 = vmatpush1.msra.mxu0 0.0
    %348 = vmatprep.subr.mxu0 0.0
    %349 = vmatpush1.msra.mxu0 0.0
    %350 = vmatprep.subr.mxu0 0.0
    %351 = vmatpush1.msra.mxu0 0.0
    %352 = vmatprep.subr.mxu0 0.0
    %353 = vmatpush1.msra.mxu0 0.0
    %354 = vmatprep.subr.mxu0 0.0
    %355 = vmatpush1.msra.mxu0 0.0
    %356 = vmatprep.subr.mxu0 0.0
    %357 = vmatpush1.msra.mxu0 0.0
    %358 = vmatprep.mubr.f32.mxu0 0.0
    %359 = vmatmul.mubr.f32.gmra.mrb[0].mxu0 %v292
    %v360 = vpop.f32.mrb[0].mxu0
    %v361 = vadd.f32 0.0, %v360
    %v362 = vpop.f32.mrb[0].mxu0
    %363 = vdwg.mxu0
    %v364 = vlog2.pop %v361
    %v365 = vmul.f32 %v364, 0.6931472
    %v366 = vadd.f32 %v233, %v365
    %vm367 = vcmask 31744
    %v368 = vsel %vm367, %v366, 0.0
    %369 = vadd.xlane.f32.xlu0 %v368
    %v370 = vpop.xlane.xlu0 %369
    %v371 = vrot.slane %v370, 4
    %v372 = vadd.f32 %v370, %v371
    %v373 = vrot.slane %v372, 2
    %v374 = vadd.f32 %v372, %v373
    %v375 = vrot.slane %v374, 1
    %v376 = vadd.f32 %v374, %v375
    %s377 = vtos %v376
    %379 = vrot.lane.b32.xlu0 %v227, 40
    %v380 = vpop.permute.xlu0 %379
    %v382 = vmul.f32 %v38, %v380
    %384 = vrot.lane.b32.xlu0 %v382, 88
    %v385 = vpop.permute.xlu0 %384
    %v387 = vsel %vm230, %v385, 0.0
    %388 = vadd.xlane.f32.xlu0 %v387
    %v389 = vpop.xlane.xlu0 %388
    %v390 = vrot.slane %v389, 4
    %v391 = vadd.f32 %v389, %v390
    %v392 = vrot.slane %v391, 2
    %v393 = vadd.f32 %v391, %v392
    %v394 = vrot.slane %v393, 1
    %v395 = vadd.f32 %v393, %v394
    %s396 = vtos %v395
    %s397 = ssub.f32 %s377, %s396
    %v398 = vrcp.pop 8.0
    %s399 = vtos %v398
    %s400 = smul.f32 %s397, %s399
    %v401 = vlog2.pop %v141
    %v402 = vmul.f32 %v401, 0.6931472
    %v403 = vlog2.pop %v142
    %v404 = vmul.f32 %v403, 0.6931472
    %v405 = vlog2.pop %v143
    %v406 = vmul.f32 %v405, 0.6931472
    %v407 = vlog2.pop %v144
    %v408 = vmul.f32 %v407, 0.6931472
    %v409 = vlog2.pop %v145
    %v410 = vmul.f32 %v409, 0.6931472
    %v411 = vsub.f32 0.0, %v402
    %v412 = vsub.f32 0.0, %v404
    %v413 = vsub.f32 0.0, %v406
    %v414 = vsub.f32 0.0, %v408
    %v415 = vsub.f32 0.0, %v410
    %v416 = vmul.f32 %v151, %v151
    %v417 = vmul.f32 %v152, %v152
    %v418 = vmul.f32 %v153, %v153
    %v419 = vmul.f32 %v154, %v154
    %v420 = vmul.f32 %v155, %v155
    %v421 = vmul.f32 %v51, %v51
    %v422 = vmul.f32 %v52, %v52
    %v423 = vmul.f32 %v53, %v53
    %v424 = vmul.f32 %v54, %v54
    %v425 = vmul.f32 %v55, %v55
    %v426 = vsub.f32 %v416, %v421
    %v427 = vsub.f32 %v417, %v422
    %v428 = vsub.f32 %v418, %v423
    %v429 = vsub.f32 %v419, %v424
    %v430 = vsub.f32 %v420, %v425
    %v431 = vmul.f32 %v426, 0.5
    %v432 = vmul.f32 %v427, 0.5
    %v433 = vmul.f32 %v428, 0.5
    %v434 = vmul.f32 %v429, 0.5
    %v435 = vmul.f32 %v430, 0.5
    %v436 = vadd.f32 %v411, %v431
    %v437 = vadd.f32 %v412, %v432
    %v438 = vadd.f32 %v413, %v433
    %v439 = vadd.f32 %v414, %v434
    %v440 = vadd.f32 %v415, %v435
    %v441 = vsel %vm230, %v436, 0.0
    %v442 = vsel %vm230, %v437, 0.0
    %v443 = vadd.f32 %v441, %v442
    %v444 = vsel %vm230, %v438, 0.0
    %v445 = vadd.f32 %v443, %v444
    %v446 = vsel %vm230, %v439, 0.0
    %v447 = vadd.f32 %v445, %v446
    %v448 = vsel %vm230, %v440, 0.0
    %v449 = vadd.f32 %v447, %v448
    %450 = vadd.xlane.f32.xlu0 %v449
    %v451 = vpop.xlane.xlu0 %450
    %v452 = vrot.slane %v451, 4
    %v453 = vadd.f32 %v451, %v452
    %v454 = vrot.slane %v453, 2
    %v455 = vadd.f32 %v453, %v454
    %v456 = vrot.slane %v455, 1
    %v457 = vadd.f32 %v455, %v456
    %s458 = vtos %v457
    %s459 = smul.f32 %s458, 0.001
    %s460 = sadd.f32 %s400, %s459
    %v461 = vrcp.pop 4.0
    %s462 = vtos %v461
    %s463 = smul.f32 %s460, %s462
    %s464 = scalar_lea.smem [#allocation7], 0
    %465 = sst [smem:[%s464]] %s463
    // Predicated region
    $region18: #{tpu_custom_call.1} parent=1 // pred_check
      _
    $region19: #{tpu_custom_call.1} parent=1 // pred_check_branch
      %467 = sbr.rel (0) target = $region21
    $region20: #{tpu_custom_call.1} parent=1 // pred_region
      %s469 = ssub.s32 16, 16
      %470 = vsyncadd [#allocation4], %s469
      %473 = dma.smem_to_hbm [#allocation7], 16, %s2, [#allocation4]
    $region21: #{tpu_custom_call.1} parent=1 // pred_fallthru
      _
    // Predicated region
    $region22: #{tpu_custom_call.1} parent=1 // pred_check
      _
    $region23: #{tpu_custom_call.1} parent=1 // pred_check_branch
      %475 = sbr.rel (0) target = $region25
    $region24: #{tpu_custom_call.1} parent=1 // pred_region
      %476 = dma.done [#allocation4], 16
    $region25: #{tpu_custom_call.1} parent=1 // pred_fallthru
      _
    %477 = sfence
    %478 = vsyncpa [#allocation3], 1
    %479 = vsyncpa [#allocation6], 1
    %480 = vsyncpa [#allocation4], 1

</llo_original>
